<compile_context>
chip_gen: v6e
topology: v6e:2x2x1
jax: 0.10.0
libtpu: 0.0.40
codegen_flags: <defaults>
</compile_context>

<pallas_src>
import jax
import jax.numpy as jnp
from jax import lax
from jax.experimental import pallas as pl
from jax.experimental.pallas import tpu as pltpu

_LANE = 128


def _mlp_kernel(x_ref, w1_ref, b1_ref, w2_ref, b2_ref, o_ref):
    # Hidden layer: relu(x @ W1^T + b1). W1 is (H, F) PyTorch layout; contract
    # on axis 1 of BOTH operands (trans_b is free on the MXU).
    h = lax.dot_general(
        x_ref[...], w1_ref[...],
        dimension_numbers=(((1,), (1,)), ((), ())),
        preferred_element_type=jnp.float32,
    )
    h = jnp.maximum(h + b1_ref[...], 0.0)          # bias + ReLU on the VPU
    # Output layer: h @ W2^T + b2, W2 is (O_pad, H) PyTorch layout (trans_b).
    o = lax.dot_general(
        h, w2_ref[...],
        dimension_numbers=(((1,), (1,)), ((), ())),
        preferred_element_type=jnp.float32,
    )
    o_ref[...] = (o + b2_ref[...]).astype(o_ref.dtype)   # lane-dense (TB, 128) store


def _round_up(n, m):
    return ((n + m - 1) // m) * m


def net_forward(x, w_hidden, b_hidden, w_out, b_out, *, block_rows=1024):
    """Forward pass matching torch Net.forward.

    x:        (B, n_feature)        float32
    w_hidden: (n_hidden, n_feature) float32  (PyTorch layout, NOT transposed)
    b_hidden: (n_hidden,)           float32
    w_out:    (n_output, n_hidden)  float32  (PyTorch layout, NOT transposed)
    b_out:    (n_output,)           float32
    returns:  (B, n_output)         float32
    """
    x = x.astype(jnp.float32)
    B, F = x.shape
    H = w_hidden.shape[0]
    O = w_out.shape[0]

    # Lane-dense output: zero-pad n_output up to a multiple of 128. Padded
    # rows of W2 / entries of b2 are zero and are sliced off below.
    O_pad = _round_up(max(O, _LANE), _LANE)
    w1_p = w_hidden.astype(jnp.float32)                                   # (H, F)
    b1_p = b_hidden.astype(jnp.float32).reshape(1, H)                     # (1, H)
    w2_p = jnp.pad(w_out.astype(jnp.float32), ((0, O_pad - O), (0, 0)))   # (O_pad, H)
    b2_p = jnp.pad(b_out.astype(jnp.float32), (0, O_pad - O)).reshape(1, O_pad)

    # Batch tiling: TB rows per grid step (multiple of 8 sublanes), capped so
    # per-step activations stay small on every generation (v5e/v6e/v7x).
    TB = min(_round_up(B, 8), _round_up(block_rows, 8))
    B_pad = _round_up(B, TB)
    if B_pad != B:
        x = jnp.pad(x, ((0, B_pad - B), (0, 0)))
    grid = (B_pad // TB,)

    out = pl.pallas_call(
        _mlp_kernel,
        out_shape=jax.ShapeDtypeStruct((B_pad, O_pad), jnp.float32),
        grid_spec=pl.GridSpec(
            grid=grid,
            in_specs=[
                pl.BlockSpec((TB, F), lambda i: (i, 0)),      # x: tiled over batch
                pl.BlockSpec((H, F), lambda i: (0, 0)),       # W1: resident in VMEM
                pl.BlockSpec((1, H), lambda i: (0, 0)),       # b1: resident
                pl.BlockSpec((O_pad, H), lambda i: (0, 0)),   # W2: resident
                pl.BlockSpec((1, O_pad), lambda i: (0, 0)),   # b2: resident
            ],
            out_specs=pl.BlockSpec((TB, O_pad), lambda i: (i, 0)),
        ),
        compiler_params=pltpu.CompilerParams(
            dimension_semantics=("parallel",),   # batch axis splits across v7x's 2 TCs
        ),
    )(x, w1_p, b1_p, w2_p, b2_p)

    return out[:B, :O]


def init_params(key, n_feature, n_hidden, n_output):
    """Deterministic PyTorch-style Linear init: U(-1/sqrt(fan_in), 1/sqrt(fan_in))."""
    k1, k2, k3, k4 = jax.random.split(key, 4)
    bound1 = 1.0 / jnp.sqrt(n_feature)
    bound2 = 1.0 / jnp.sqrt(n_hidden)
    w_hidden = jax.random.uniform(k1, (n_hidden, n_feature), jnp.float32, -bound1, bound1)
    b_hidden = jax.random.uniform(k2, (n_hidden,), jnp.float32, -bound1, bound1)
    w_out = jax.random.uniform(k3, (n_output, n_hidden), jnp.float32, -bound2, bound2)
    b_out = jax.random.uniform(k4, (n_output,), jnp.float32, -bound2, bound2)
    return w_hidden, b_hidden, w_out, b_out


if __name__ == "__main__":
    key = jax.random.PRNGKey(0)
    n_feature, n_hidden, n_output = 2, 10, 2
    batch = 200  # 100 samples per Gaussian blob, as in the original script

    kx, kp = jax.random.split(key)
    x = jnp.concatenate(
        [
            2.0 + jax.random.normal(kx, (batch // 2, n_feature), jnp.float32),
            -2.0 + jax.random.normal(jax.random.fold_in(kx, 1), (batch // 2, n_feature), jnp.float32),
        ],
        axis=0,
    )

    w_hidden, b_hidden, w_out, b_out = init_params(kp, n_feature, n_hidden, n_output)

    out = net_forward(x, w_hidden, b_hidden, w_out, b_out)
    out = jax.block_until_ready(out)

    # Reference check in plain JAX (same math as torch Net.forward).
    ref = jnp.maximum(x @ w_hidden.T + b_hidden, 0.0) @ w_out.T + b_out
    assert out.shape == (batch, n_output)
    assert jnp.allclose(out, ref, atol=1e-4, rtol=1e-4)

    print("KERNEL_OK")
</pallas_src>

<mosaic_0001>
module attributes {stable_mosaic.version = 11 : i64} {
  func.func @_mlp_kernel(%arg0: i32, %arg1: memref<200x2xf32, #tpu.memory_space<vmem>>, %arg2: memref<10x2xf32, #tpu.memory_space<vmem>>, %arg3: memref<1x10xf32, #tpu.memory_space<vmem>>, %arg4: memref<128x10xf32, #tpu.memory_space<vmem>>, %arg5: memref<1x128xf32, #tpu.memory_space<vmem>>, %arg6: memref<200x128xf32, #tpu.memory_space<vmem>>) attributes {dimension_semantics = [#tpu.dimension_semantics<parallel>], iteration_bounds = array<i64: 1>, scalar_prefetch = 0 : i64, scratch_operands = 0 : i64, tpu.core_type = #tpu.core_type<tc>, window_params = [{transform_indices = @transform_0, window_bounds = array<i64: 200, 2>}, {pipeline_mode = #tpu.pipeline_mode<synchronous>, transform_indices = @transform_1, window_bounds = array<i64: 10, 2>}, {pipeline_mode = #tpu.pipeline_mode<synchronous>, transform_indices = @transform_2, window_bounds = array<i64: 1, 10>}, {pipeline_mode = #tpu.pipeline_mode<synchronous>, transform_indices = @transform_3, window_bounds = array<i64: 128, 10>}, {pipeline_mode = #tpu.pipeline_mode<synchronous>, transform_indices = @transform_4, window_bounds = array<i64: 1, 128>}, {transform_indices = @transform_5, window_bounds = array<i64: 200, 128>}]} {
    %c0 = arith.constant 0 : index
    %c0_0 = arith.constant 0 : index
    %0 = vector.load %arg1[%c0, %c0_0] : memref<200x2xf32, #tpu.memory_space<vmem>>, vector<200x2xf32>
    %c0_1 = arith.constant 0 : index
    %c0_2 = arith.constant 0 : index
    %1 = vector.load %arg2[%c0_1, %c0_2] : memref<10x2xf32, #tpu.memory_space<vmem>>, vector<10x2xf32>
    %cst = arith.constant dense<0.000000e+00> : vector<200x10xf32>
    %2 = tpu.matmul %0, %1, %cst {dimension_numbers = #tpu.dot_dimension_numbers<[1], [1], [0], [0], [0, 0, 1, 0], [], []>} : vector<200x2xf32>, vector<10x2xf32>, vector<200x10xf32> -> vector<200x10xf32>
    %c0_3 = arith.constant 0 : index
    %c0_4 = arith.constant 0 : index
    %3 = vector.load %arg3[%c0_3, %c0_4] : memref<1x10xf32, #tpu.memory_space<vmem>>, vector<1x10xf32>
    %4 = vector.broadcast %3 : vector<1x10xf32> to vector<200x10xf32>
    %5 = arith.addf %2, %4 : vector<200x10xf32>
    %cst_5 = arith.constant 0.000000e+00 : f32
    %6 = vector.broadcast %cst_5 : f32 to vector<200x10xf32>
    %7 = arith.maximumf %5, %6 : vector<200x10xf32>
    %c0_6 = arith.constant 0 : index
    %c0_7 = arith.constant 0 : index
    %8 = vector.load %arg4[%c0_6, %c0_7] : memref<128x10xf32, #tpu.memory_space<vmem>>, vector<128x10xf32>
    %cst_8 = arith.constant dense<0.000000e+00> : vector<200x128xf32>
    %9 = tpu.matmul %7, %8, %cst_8 {dimension_numbers = #tpu.dot_dimension_numbers<[1], [1], [0], [0], [0, 0, 1, 0], [], []>} : vector<200x10xf32>, vector<128x10xf32>, vector<200x128xf32> -> vector<200x128xf32>
    %c0_9 = arith.constant 0 : index
    %c0_10 = arith.constant 0 : index
    %10 = vector.load %arg5[%c0_9, %c0_10] : memref<1x128xf32, #tpu.memory_space<vmem>>, vector<1x128xf32>
    %11 = vector.broadcast %10 : vector<1x128xf32> to vector<200x128xf32>
    %12 = arith.addf %9, %11 : vector<200x128xf32>
    %c0_11 = arith.constant 0 : index
    %c0_12 = arith.constant 0 : index
    %13 = vector.load %arg6[%c0_11, %c0_12] : memref<200x128xf32, #tpu.memory_space<vmem>>, vector<200x128xf32>
    tpu.vector_store %arg6[%c0_11, %c0_12], %12 {strides = array<i32>} : memref<200x128xf32, #tpu.memory_space<vmem>>, vector<200x128xf32>,
    return
  }
  func.func @transform_0(%arg0: i32) -> (i32, i32) {
    %c0_i32 = arith.constant 0 : i32
    %c0_i32_0 = arith.constant 0 : i32
    return %arg0, %c0_i32 : i32, i32
  }
  func.func @transform_1(%arg0: i32) -> (i32, i32) {
    %c0_i32 = arith.constant 0 : i32
    %c0_i32_0 = arith.constant 0 : i32
    %c0_i32_1 = arith.constant 0 : i32
    return %c0_i32, %c0_i32_0 : i32, i32
  }
  func.func @transform_2(%arg0: i32) -> (i32, i32) {
    %c0_i32 = arith.constant 0 : i32
    %c0_i32_0 = arith.constant 0 : i32
    %c0_i32_1 = arith.constant 0 : i32
    return %c0_i32, %c0_i32_0 : i32, i32
  }
  func.func @transform_3(%arg0: i32) -> (i32, i32) {
    %c0_i32 = arith.constant 0 : i32
    %c0_i32_0 = arith.constant 0 : i32
    %c0_i32_1 = arith.constant 0 : i32
    return %c0_i32, %c0_i32_0 : i32, i32
  }
  func.func @transform_4(%arg0: i32) -> (i32, i32) {
    %c0_i32 = arith.constant 0 : i32
    %c0_i32_0 = arith.constant 0 : i32
    %c0_i32_1 = arith.constant 0 : i32
    return %c0_i32, %c0_i32_0 : i32, i32
  }
  func.func @transform_5(%arg0: i32) -> (i32, i32) {
    %c0_i32 = arith.constant 0 : i32
    %c0_i32_0 = arith.constant 0 : i32
    return %arg0, %c0_i32 : i32, i32
  }
}

</mosaic_0001>

<llo_original>
// kernel: tpu_custom_call.1
$region0: #{tpu_custom_call.1}
  #allocation0 [shape = 'u32[]', space=smem, size = 0x4, offset = 0x4, fixed_abs, tag = 'smem constant byte address 0x4 - core index']
  #allocation1 [shape = 'u32[144,128]{1,0:T(1,128)}', space=vmem, size = 0x12000, scoped, tag = 'internal scratch']
  %s0 = inlined_call_operand.vmem [shape: f32[200,2], index: 0, kind: input, shape index: {}]
  %s1 = inlined_call_operand.vmem [shape: f32[10,2], index: 1, kind: input, shape index: {}]
  %s2 = inlined_call_operand.vmem [shape: f32[1,10], index: 2, kind: input, shape index: {}]
  %s3 = inlined_call_operand.vmem [shape: f32[128,10], index: 3, kind: input, shape index: {}]
  %s4 = inlined_call_operand.vmem [shape: f32[1,128], index: 4, kind: input, shape index: {}]
  %s5 = inlined_call_operand.hbm [shape: f32[200,128], index: 5, kind: output, shape index: {}]
  %s6 = sld [smem:[#allocation0]]
  $region30: #{tpu_custom_call.1} parent=0
    _
  %s8 = ssub.s32 1, %s6
  %s9 = scalar_select 0, %s8, %s6
  $region1: #{tpu_custom_call.1} parent=0
    #allocation2 [shape = 'u8[102400]{0}', space=vmem, size = 0x19000, scoped, tag = 'output window, operand 0, single buffered']
    #allocation3 [shape = 's32[1]{0}', space=sflag, size = 0x4, scoped, tag = 'scoped memory for tpu_custom_call.1']
    %10 = vsyncpa [#allocation3], 0
    // Predicated region
    $region2: #{tpu_custom_call.1} parent=1 // pred_check
      _
    $region3: #{tpu_custom_call.1} parent=1 // pred_check_branch
      %12 = sbr.rel (0) target = $region5
    $region4: #{tpu_custom_call.1} parent=1 // pred_region
      _
    $region5: #{tpu_custom_call.1} parent=1 // pred_fallthru
      _
    // Predicated region
    $region6: #{tpu_custom_call.1} parent=1 // pred_check
      _
    $region7: #{tpu_custom_call.1} parent=1 // pred_check_branch
      %14 = sbr.rel (0) target = $region9
    $region8: #{tpu_custom_call.1} parent=1 // pred_region
      _
    $region9: #{tpu_custom_call.1} parent=1 // pred_fallthru
      _
    // Predicated region
    $region10: #{tpu_custom_call.1} parent=1 // pred_check
      _
    $region11: #{tpu_custom_call.1} parent=1 // pred_check_branch
      %16 = sbr.rel (0) target = $region13
    $region12: #{tpu_custom_call.1} parent=1 // pred_region
      _
    $region13: #{tpu_custom_call.1} parent=1 // pred_fallthru
      _
    // Predicated region
    $region14: #{tpu_custom_call.1} parent=1 // pred_check
      _
    $region15: #{tpu_custom_call.1} parent=1 // pred_check_branch
      %18 = sbr.rel (0) target = $region17
    $region16: #{tpu_custom_call.1} parent=1 // pred_region
      _
    $region17: #{tpu_custom_call.1} parent=1 // pred_fallthru
      _
    // Predicated region
    $region18: #{tpu_custom_call.1} parent=1 // pred_check
      _
    $region19: #{tpu_custom_call.1} parent=1 // pred_check_branch
      %20 = sbr.rel (0) target = $region21
    $region20: #{tpu_custom_call.1} parent=1 // pred_region
      _
    $region21: #{tpu_custom_call.1} parent=1 // pred_fallthru
      _
    %v21 = vld [vmem:[%s0] sm:$0xff]
    %v22 = vld [vmem:[%s0 + $0x8] sm:$0xff]
    %v23 = vld [vmem:[%s0 + $0x10] sm:$0xff]
    %v24 = vld [vmem:[%s0 + $0x18] sm:$0xff]
    %v25 = vld [vmem:[%s0 + $0x20] sm:$0xff]
    %v26 = vld [vmem:[%s0 + $0x28] sm:$0xff]
    %v27 = vld [vmem:[%s0 + $0x30] sm:$0xff]
    %v28 = vld [vmem:[%s0 + $0x38] sm:$0xff]
    %v29 = vld [vmem:[%s0 + $0x40] sm:$0xff]
    %v30 = vld [vmem:[%s0 + $0x48] sm:$0xff]
    %v31 = vld [vmem:[%s0 + $0x50] sm:$0xff]
    %v32 = vld [vmem:[%s0 + $0x58] sm:$0xff]
    %v33 = vld [vmem:[%s0 + $0x60] sm:$0xff]
    %v34 = vld [vmem:[%s0 + $0x68] sm:$0xff]
    %v35 = vld [vmem:[%s0 + $0x70] sm:$0xff]
    %v36 = vld [vmem:[%s0 + $0x78] sm:$0xff]
    %v37 = vld [vmem:[%s0 + $0x80] sm:$0xff]
    %v38 = vld [vmem:[%s0 + $0x88] sm:$0xff]
    %v39 = vld [vmem:[%s0 + $0x90] sm:$0xff]
    %v40 = vld [vmem:[%s0 + $0x98] sm:$0xff]
    %v41 = vld [vmem:[%s0 + $0xa0] sm:$0xff]
    %v42 = vld [vmem:[%s0 + $0xa8] sm:$0xff]
    %v43 = vld [vmem:[%s0 + $0xb0] sm:$0xff]
    %v44 = vld [vmem:[%s0 + $0xb8] sm:$0xff]
    %v45 = vld [vmem:[%s0 + $0xc0] sm:$0xff]
    %v46 = vld [vmem:[%s1] sm:$0xff]
    %v47 = vld [vmem:[%s1 + $0x8] sm:$0x3]
    %v48 = vld [vmem:[%s2] sm:$0x1]
    %v50 = vlaneseq
    %v51 = vshrl.u32 %v50, 7
    %v52 = vsub.s32 0, %v51
    %v53 = vrot.slane %v48, %v52
    %vm55 = vcmask 15360
    %v57 = vsel %vm55, %v21, 0
    %v60 = vsel %vm55, %v22, 0
    %v63 = vsel %vm55, %v23, 0
    %v66 = vsel %vm55, %v24, 0
    %v69 = vsel %vm55, %v25, 0
    %v72 = vsel %vm55, %v26, 0
    %v75 = vsel %vm55, %v27, 0
    %v78 = vsel %vm55, %v28, 0
    %v81 = vsel %vm55, %v29, 0
    %v84 = vsel %vm55, %v30, 0
    %v87 = vsel %vm55, %v31, 0
    %v90 = vsel %vm55, %v32, 0
    %v93 = vsel %vm55, %v33, 0
    %v96 = vsel %vm55, %v34, 0
    %v99 = vsel %vm55, %v35, 0
    %v102 = vsel %vm55, %v36, 0
    %v105 = vsel %vm55, %v37, 0
    %v108 = vsel %vm55, %v38, 0
    %v111 = vsel %vm55, %v39, 0
    %v114 = vsel %vm55, %v40, 0
    %v117 = vsel %vm55, %v41, 0
    %v120 = vsel %vm55, %v42, 0
    %v123 = vsel %vm55, %v43, 0
    %v126 = vsel %vm55, %v44, 0
    %v129 = vsel %vm55, %v45, 0
    %v132 = vsel %vm55, %v46, 0
    %v135 = vsel %vm55, %v47, 0
    %137 = vmatprep.subr.mxu0 0.0
    %138 = vmatpush1.xpose.msra.mxu0 0.0
    %139 = vmatprep.subr.mxu0 0.0
    %140 = vmatpush1.xpose.msra.mxu0 0.0
    %141 = vmatprep.subr.mxu0 0.0
    %142 = vmatpush1.xpose.msra.mxu0 0.0
    %143 = vmatprep.subr.mxu0 0.0
    %144 = vmatpush1.xpose.msra.mxu0 0.0
    %145 = vmatprep.subr.mxu0 0.0
    %146 = vmatpush1.xpose.msra.mxu0 0.0
    %147 = vmatprep.subr.mxu0 0.0
    %148 = vmatpush1.xpose.msra.mxu0 0.0
    %149 = vmatprep.subr.mxu0 0.0
    %150 = vmatpush1.xpose.msra.mxu0 0.0
    %151 = vmatprep.subr.mxu0 0.0
    %152 = vmatpush1.xpose.msra.mxu0 0.0
    %153 = vmatprep.subr.mxu0 0.0
    %154 = vmatpush1.xpose.msra.mxu0 0.0
    %155 = vmatprep.subr.mxu0 0.0
    %156 = vmatpush1.xpose.msra.mxu0 0.0
    %157 = vmatprep.subr.mxu0 0.0
    %158 = vmatpush1.xpose.msra.mxu0 0.0
    %159 = vmatprep.subr.mxu0 0.0
    %160 = vmatpush1.xpose.msra.mxu0 0.0
    %161 = vmatprep.subr.mxu0 0.0
    %162 = vmatpush1.xpose.msra.mxu0 0.0
    %163 = vmatprep.subr.mxu0 0.0
    %164 = vmatpush1.xpose.msra.mxu0 0.0
    %165 = vmatprep.subr.mxu0 0.0
    %166 = vmatpush1.xpose.msra.mxu0 %v135
    %167 = vmatprep.subr.mxu0 0.0
    %168 = vmatpush1.xpose.msra.mxu0 %v132
    %169 = vmatprep.subr.mxu0 0.0
    %170 = vmatpush2.xpose.msra.mxu0 0.0
    %171 = vmatprep.subr.mxu0 0.0
    %172 = vmatpush2.xpose.msra.mxu0 0.0
    %173 = vmatprep.subr.mxu0 0.0
    %174 = vmatpush2.xpose.msra.mxu0 0.0
    %175 = vmatprep.subr.mxu0 0.0
    %176 = vmatpush2.xpose.msra.mxu0 0.0
    %177 = vmatprep.subr.mxu0 0.0
    %178 = vmatpush2.xpose.msra.mxu0 0.0
    %179 = vmatprep.subr.mxu0 0.0
    %180 = vmatpush2.xpose.msra.mxu0 0.0
    %181 = vmatprep.subr.mxu0 0.0
    %182 = vmatpush2.xpose.msra.mxu0 0.0
    %183 = vmatprep.subr.mxu0 0.0
    %184 = vmatpush2.xpose.msra.mxu0 0.0
    %185 = vmatprep.subr.mxu0 0.0
    %186 = vmatpush2.xpose.msra.mxu0 0.0
    %187 = vmatprep.subr.mxu0 0.0
    %188 = vmatpush2.xpose.msra.mxu0 0.0
    %189 = vmatprep.subr.mxu0 0.0
    %190 = vmatpush2.xpose.msra.mxu0 0.0
    %191 = vmatprep.subr.mxu0 0.0
    %192 = vmatpush2.xpose.msra.mxu0 0.0
    %193 = vmatprep.subr.mxu0 0.0
    %194 = vmatpush2.xpose.msra.mxu0 0.0
    %195 = vmatprep.subr.mxu0 0.0
    %196 = vmatpush2.xpose.msra.mxu0 0.0
    %197 = vmatprep.subr.mxu0 0.0
    %198 = vmatpush2.xpose.msra.mxu0 0.0
    %199 = vmatprep.subr.mxu0 0.0
    %200 = vmatpush2.xpose.msra.mxu0 0.0
    %201 = vmatprep.mubr.f32.mxu0 0.0
    %202 = vmatmul.mubr.f32.gmra.mxu0 %v57
    %v203 = vpop.f32.mrf.mxu0
    %v204 = vadd.f32 %v53, %v203
    %v205 = vpop.f32.mrf.mxu0
    %206 = vmatprep.mubr.f32.mxu0 0.0
    %207 = vmatmul.mubr.f32.gmra.mxu0 %v60
    %v208 = vpop.f32.mrf.mxu0
    %v209 = vadd.f32 %v53, %v208
    %v210 = vpop.f32.mrf.mxu0
    %211 = vmatprep.mubr.f32.mxu0 0.0
    %212 = vmatmul.mubr.f32.gmra.mxu0 %v63
    %v213 = vpop.f32.mrf.mxu0
    %v214 = vadd.f32 %v53, %v213
    %v215 = vpop.f32.mrf.mxu0
    %216 = vmatprep.mubr.f32.mxu0 0.0
    %217 = vmatmul.mubr.f32.gmra.mxu0 %v66
    %v218 = vpop.f32.mrf.mxu0
    %v219 = vadd.f32 %v53, %v218
    %v220 = vpop.f32.mrf.mxu0
    %221 = vmatprep.mubr.f32.mxu0 0.0
    %222 = vmatmul.mubr.f32.gmra.mxu0 %v69
    %v223 = vpop.f32.mrf.mxu0
    %v224 = vadd.f32 %v53, %v223
    %v225 = vpop.f32.mrf.mxu0
    %226 = vmatprep.mubr.f32.mxu0 0.0
    %227 = vmatmul.mubr.f32.gmra.mxu0 %v72
    %v228 = vpop.f32.mrf.mxu0
    %v229 = vadd.f32 %v53, %v228
    %v230 = vpop.f32.mrf.mxu0
    %231 = vmatprep.mubr.f32.mxu0 0.0
    %232 = vmatmul.mubr.f32.gmra.mxu0 %v75
    %v233 = vpop.f32.mrf.mxu0
    %v234 = vadd.f32 %v53, %v233
    %v235 = vpop.f32.mrf.mxu0
    %236 = vmatprep.mubr.f32.mxu0 0.0
    %237 = vmatmul.mubr.f32.gmra.mxu0 %v78
    %v238 = vpop.f32.mrf.mxu0
    %v239 = vadd.f32 %v53, %v238
    %v240 = vpop.f32.mrf.mxu0
    %241 = vmatprep.mubr.f32.mxu0 0.0
    %242 = vmatmul.mubr.f32.gmra.mxu0 %v81
    %v243 = vpop.f32.mrf.mxu0
    %v244 = vadd.f32 %v53, %v243
    %v245 = vpop.f32.mrf.mxu0
    %246 = vmatprep.mubr.f32.mxu0 0.0
    %247 = vmatmul.mubr.f32.gmra.mxu0 %v84
    %v248 = vpop.f32.mrf.mxu0
    %v249 = vadd.f32 %v53, %v248
    %v250 = vpop.f32.mrf.mxu0
    %251 = vmatprep.mubr.f32.mxu0 0.0
    %252 = vmatmul.mubr.f32.gmra.mxu0 %v87
    %v253 = vpop.f32.mrf.mxu0
    %v254 = vadd.f32 %v53, %v253
    %v255 = vpop.f32.mrf.mxu0
    %256 = vmatprep.mubr.f32.mxu0 0.0
    %257 = vmatmul.mubr.f32.gmra.mxu0 %v90
    %v258 = vpop.f32.mrf.mxu0
    %v259 = vadd.f32 %v53, %v258
    %v260 = vpop.f32.mrf.mxu0
    %261 = vmatprep.mubr.f32.mxu0 0.0
    %262 = vmatmul.mubr.f32.gmra.mxu0 %v93
    %v263 = vpop.f32.mrf.mxu0
    %v264 = vadd.f32 %v53, %v263
    %v265 = vpop.f32.mrf.mxu0
    %266 = vmatprep.mubr.f32.mxu0 0.0
    %267 = vmatmul.mubr.f32.gmra.mxu0 %v96
    %v268 = vpop.f32.mrf.mxu0
    %v269 = vadd.f32 %v53, %v268
    %v270 = vpop.f32.mrf.mxu0
    %271 = vmatprep.mubr.f32.mxu0 0.0
    %272 = vmatmul.mubr.f32.gmra.mxu0 %v99
    %v273 = vpop.f32.mrf.mxu0
    %v274 = vadd.f32 %v53, %v273
    %v275 = vpop.f32.mrf.mxu0
    %276 = vmatprep.mubr.f32.mxu0 0.0
    %277 = vmatmul.mubr.f32.gmra.mxu0 %v102
    %v278 = vpop.f32.mrf.mxu0
    %v279 = vadd.f32 %v53, %v278
    %v280 = vpop.f32.mrf.mxu0
    %281 = vmatprep.mubr.f32.mxu0 0.0
    %282 = vmatmul.mubr.f32.gmra.mxu0 %v105
    %v283 = vpop.f32.mrf.mxu0
    %v284 = vadd.f32 %v53, %v283
    %v285 = vpop.f32.mrf.mxu0
    %286 = vmatprep.mubr.f32.mxu0 0.0
    %287 = vmatmul.mubr.f32.gmra.mxu0 %v108
    %v288 = vpop.f32.mrf.mxu0
    %v289 = vadd.f32 %v53, %v288
    %v290 = vpop.f32.mrf.mxu0
    %291 = vmatprep.mubr.f32.mxu0 0.0
    %292 = vmatmul.mubr.f32.gmra.mxu0 %v111
    %v293 = vpop.f32.mrf.mxu0
    %v294 = vadd.f32 %v53, %v293
    %v295 = vpop.f32.mrf.mxu0
    %296 = vmatprep.mubr.f32.mxu0 0.0
    %297 = vmatmul.mubr.f32.gmra.mxu0 %v114
    %v298 = vpop.f32.mrf.mxu0
    %v299 = vadd.f32 %v53, %v298
    %v300 = vpop.f32.mrf.mxu0
    %301 = vmatprep.mubr.f32.mxu0 0.0
    %302 = vmatmul.mubr.f32.gmra.mxu0 %v117
    %v303 = vpop.f32.mrf.mxu0
    %v304 = vadd.f32 %v53, %v303
    %v305 = vpop.f32.mrf.mxu0
    %306 = vmatprep.mubr.f32.mxu0 0.0
    %307 = vmatmul.mubr.f32.gmra.mxu0 %v120
    %v308 = vpop.f32.mrf.mxu0
    %v309 = vadd.f32 %v53, %v308
    %v310 = vpop.f32.mrf.mxu0
    %311 = vmatprep.mubr.f32.mxu0 0.0
    %312 = vmatmul.mubr.f32.gmra.mxu0 %v123
    %v313 = vpop.f32.mrf.mxu0
    %v314 = vadd.f32 %v53, %v313
    %v315 = vpop.f32.mrf.mxu0
    %316 = vmatprep.mubr.f32.mxu0 0.0
    %317 = vmatmul.mubr.f32.gmra.mxu0 %v126
    %v318 = vpop.f32.mrf.mxu0
    %v319 = vadd.f32 %v53, %v318
    %v320 = vpop.f32.mrf.mxu0
    %321 = vmatprep.mubr.f32.mxu0 0.0
    %322 = vmatmul.mubr.f32.gmra.mxu0 %v129
    %v323 = vpop.f32.mrf.mxu0
    %v324 = vadd.f32 %v53, %v323
    %v325 = vpop.f32.mrf.mxu0
    %326 = vdwg.mxu0
    %v327 = vmax.f32 %v204, 0.0
    %v328 = vmax.f32 %v209, 0.0
    %v329 = vmax.f32 %v214, 0.0
    %v330 = vmax.f32 %v219, 0.0
    %v331 = vmax.f32 %v224, 0.0
    %v332 = vmax.f32 %v229, 0.0
    %v333 = vmax.f32 %v234, 0.0
    %v334 = vmax.f32 %v239, 0.0
    %v335 = vmax.f32 %v244, 0.0
    %v336 = vmax.f32 %v249, 0.0
    %v337 = vmax.f32 %v254, 0.0
    %v338 = vmax.f32 %v259, 0.0
    %v339 = vmax.f32 %v264, 0.0
    %v340 = vmax.f32 %v269, 0.0
    %v341 = vmax.f32 %v274, 0.0
    %v342 = vmax.f32 %v279, 0.0
    %v343 = vmax.f32 %v284, 0.0
    %v344 = vmax.f32 %v289, 0.0
    %v345 = vmax.f32 %v294, 0.0
    %v346 = vmax.f32 %v299, 0.0
    %v347 = vmax.f32 %v304, 0.0
    %v348 = vmax.f32 %v309, 0.0
    %v349 = vmax.f32 %v314, 0.0
    %v350 = vmax.f32 %v319, 0.0
    %v351 = vmax.f32 %v324, 0.0
    %v352 = vld [vmem:[%s3] sm:$0xff]
    %v353 = vld [vmem:[%s3 + $0x8] sm:$0xff]
    %v354 = vld [vmem:[%s3 + $0x10] sm:$0xff]
    %v355 = vld [vmem:[%s3 + $0x18] sm:$0xff]
    %v356 = vld [vmem:[%s3 + $0x20] sm:$0xff]
    %v357 = vld [vmem:[%s3 + $0x28] sm:$0xff]
    %v358 = vld [vmem:[%s3 + $0x30] sm:$0xff]
    %v359 = vld [vmem:[%s3 + $0x38] sm:$0xff]
    %v360 = vld [vmem:[%s3 + $0x40] sm:$0xff]
    %v361 = vld [vmem:[%s3 + $0x48] sm:$0xff]
    %v362 = vld [vmem:[%s3 + $0x50] sm:$0xff]
    %v363 = vld [vmem:[%s3 + $0x58] sm:$0xff]
    %v364 = vld [vmem:[%s3 + $0x60] sm:$0xff]
    %v365 = vld [vmem:[%s3 + $0x68] sm:$0xff]
    %v366 = vld [vmem:[%s3 + $0x70] sm:$0xff]
    %v367 = vld [vmem:[%s3 + $0x78] sm:$0xff]
    %v368 = vld [vmem:[%s4] sm:$0x1]
    %v370 = vlaneseq
    %v371 = vshrl.u32 %v370, 7
    %v372 = vsub.s32 0, %v371
    %v373 = vrot.slane %v368, %v372
    %vm375 = vcmask 80896
    %v377 = vsel %vm375, %v327, 0
    %v380 = vsel %vm375, %v328, 0
    %v383 = vsel %vm375, %v329, 0
    %v386 = vsel %vm375, %v330, 0
    %v389 = vsel %vm375, %v331, 0
    %v392 = vsel %vm375, %v332, 0
    %v395 = vsel %vm375, %v333, 0
    %v398 = vsel %vm375, %v334, 0
    %v401 = vsel %vm375, %v335, 0
    %v404 = vsel %vm375, %v336, 0
    %v407 = vsel %vm375, %v337, 0
    %v410 = vsel %vm375, %v338, 0
    %v413 = vsel %vm375, %v339, 0
    %v416 = vsel %vm375, %v340, 0
    %v419 = vsel %vm375, %v341, 0
    %v422 = vsel %vm375, %v342, 0
    %v425 = vsel %vm375, %v343, 0
    %v428 = vsel %vm375, %v344, 0
    %v431 = vsel %vm375, %v345, 0
    %v434 = vsel %vm375, %v346, 0
    %v437 = vsel %vm375, %v347, 0
    %v440 = vsel %vm375, %v348, 0
    %v443 = vsel %vm375, %v349, 0
    %v446 = vsel %vm375, %v350, 0
    %v449 = vsel %vm375, %v351, 0
    %v452 = vsel %vm375, %v352, 0
    %v455 = vsel %vm375, %v353, 0
    %v458 = vsel %vm375, %v354, 0
    %v461 = vsel %vm375, %v355, 0
    %v464 = vsel %vm375, %v356, 0
    %v467 = vsel %vm375, %v357, 0
    %v470 = vsel %vm375, %v358, 0
    %v473 = vsel %vm375, %v359, 0
    %v476 = vsel %vm375, %v360, 0
    %v479 = vsel %vm375, %v361, 0
    %v482 = vsel %vm375, %v362, 0
    %v485 = vsel %vm375, %v363, 0
    %v488 = vsel %vm375, %v364, 0
    %v491 = vsel %vm375, %v365, 0
    %v494 = vsel %vm375, %v366, 0
    %v497 = vsel %vm375, %v367, 0
    %499 = vmatprep.subr.mxu0 0.0
    %500 = vmatpush1.xpose.msra.mxu0 %v497
    %501 = vmatprep.subr.mxu0 0.0
    %502 = vmatpush1.xpose.msra.mxu0 %v494
    %503 = vmatprep.subr.mxu0 0.0
    %504 = vmatpush1.xpose.msra.mxu0 %v491
    %505 = vmatprep.subr.mxu0 0.0
    %506 = vmatpush1.xpose.msra.mxu0 %v488
    %507 = vmatprep.subr.mxu0 0.0
    %508 = vmatpush1.xpose.msra.mxu0 %v485
    %509 = vmatprep.subr.mxu0 0.0
    %510 = vmatpush1.xpose.msra.mxu0 %v482
    %511 = vmatprep.subr.mxu0 0.0
    %512 = vmatpush1.xpose.msra.mxu0 %v479
    %513 = vmatprep.subr.mxu0 0.0
    %514 = vmatpush1.xpose.msra.mxu0 %v476
    %515 = vmatprep.subr.mxu0 0.0
    %516 = vmatpush1.xpose.msra.mxu0 %v473
    %517 = vmatprep.subr.mxu0 0.0
    %518 = vmatpush1.xpose.msra.mxu0 %v470
    %519 = vmatprep.subr.mxu0 0.0
    %520 = vmatpush1.xpose.msra.mxu0 %v467
    %521 = vmatprep.subr.mxu0 0.0
    %522 = vmatpush1.xpose.msra.mxu0 %v464
    %523 = vmatprep.subr.mxu0 0.0
    %524 = vmatpush1.xpose.msra.mxu0 %v461
    %525 = vmatprep.subr.mxu0 0.0
    %526 = vmatpush1.xpose.msra.mxu0 %v458
    %527 = vmatprep.subr.mxu0 0.0
    %528 = vmatpush1.xpose.msra.mxu0 %v455
    %529 = vmatprep.subr.mxu0 0.0
    %530 = vmatpush1.xpose.msra.mxu0 %v452
    %531 = vmatprep.subr.mxu0 0.0
    %532 = vmatpush2.xpose.msra.mxu0 0.0
    %533 = vmatprep.subr.mxu0 0.0
    %534 = vmatpush2.xpose.msra.mxu0 0.0
    %535 = vmatprep.subr.mxu0 0.0
    %536 = vmatpush2.xpose.msra.mxu0 0.0
    %537 = vmatprep.subr.mxu0 0.0
    %538 = vmatpush2.xpose.msra.mxu0 0.0
    %539 = vmatprep.subr.mxu0 0.0
    %540 = vmatpush2.xpose.msra.mxu0 0.0
    %541 = vmatprep.subr.mxu0 0.0
    %542 = vmatpush2.xpose.msra.mxu0 0.0
    %543 = vmatprep.subr.mxu0 0.0
    %544 = vmatpush2.xpose.msra.mxu0 0.0
    %545 = vmatprep.subr.mxu0 0.0
    %546 = vmatpush2.xpose.msra.mxu0 0.0
    %547 = vmatprep.subr.mxu0 0.0
    %548 = vmatpush2.xpose.msra.mxu0 0.0
    %549 = vmatprep.subr.mxu0 0.0
    %550 = vmatpush2.xpose.msra.mxu0 0.0
    %551 = vmatprep.subr.mxu0 0.0
    %552 = vmatpush2.xpose.msra.mxu0 0.0
    %553 = vmatprep.subr.mxu0 0.0
    %554 = vmatpush2.xpose.msra.mxu0 0.0
    %555 = vmatprep.subr.mxu0 0.0
    %556 = vmatpush2.xpose.msra.mxu0 0.0
    %557 = vmatprep.subr.mxu0 0.0
    %558 = vmatpush2.xpose.msra.mxu0 0.0
    %559 = vmatprep.subr.mxu0 0.0
    %560 = vmatpush2.xpose.msra.mxu0 0.0
    %561 = vmatprep.subr.mxu0 0.0
    %562 = vmatpush2.xpose.msra.mxu0 0.0
    %563 = vmatprep.mubr.f32.mxu0 0.0
    %564 = vmatmul.mubr.f32.gmra.mxu0 %v377
    %v565 = vpop.f32.mrf.mxu0
    %v566 = vadd.f32 %v373, %v565
    %v567 = vpop.f32.mrf.mxu0
    %568 = vmatprep.mubr.f32.mxu0 0.0
    %569 = vmatmul.mubr.f32.gmra.mxu0 %v380
    %v570 = vpop.f32.mrf.mxu0
    %v571 = vadd.f32 %v373, %v570
    %v572 = vpop.f32.mrf.mxu0
    %573 = vmatprep.mubr.f32.mxu0 0.0
    %574 = vmatmul.mubr.f32.gmra.mxu0 %v383
    %v575 = vpop.f32.mrf.mxu0
    %v576 = vadd.f32 %v373, %v575
    %v577 = vpop.f32.mrf.mxu0
    %578 = vmatprep.mubr.f32.mxu0 0.0
    %579 = vmatmul.mubr.f32.gmra.mxu0 %v386
    %v580 = vpop.f32.mrf.mxu0
    %v581 = vadd.f32 %v373, %v580
    %v582 = vpop.f32.mrf.mxu0
    %583 = vmatprep.mubr.f32.mxu0 0.0
    %584 = vmatmul.mubr.f32.gmra.mxu0 %v389
    %v585 = vpop.f32.mrf.mxu0
    %v586 = vadd.f32 %v373, %v585
    %v587 = vpop.f32.mrf.mxu0
    %588 = vmatprep.mubr.f32.mxu0 0.0
    %589 = vmatmul.mubr.f32.gmra.mxu0 %v392
    %v590 = vpop.f32.mrf.mxu0
    %v591 = vadd.f32 %v373, %v590
    %v592 = vpop.f32.mrf.mxu0
    %593 = vmatprep.mubr.f32.mxu0 0.0
    %594 = vmatmul.mubr.f32.gmra.mxu0 %v395
    %v595 = vpop.f32.mrf.mxu0
    %v596 = vadd.f32 %v373, %v595
    %v597 = vpop.f32.mrf.mxu0
    %598 = vmatprep.mubr.f32.mxu0 0.0
    %599 = vmatmul.mubr.f32.gmra.mxu0 %v398
    %v600 = vpop.f32.mrf.mxu0
    %v601 = vadd.f32 %v373, %v600
    %v602 = vpop.f32.mrf.mxu0
    %603 = vmatprep.mubr.f32.mxu0 0.0
    %604 = vmatmul.mubr.f32.gmra.mxu0 %v401
    %v605 = vpop.f32.mrf.mxu0
    %v606 = vadd.f32 %v373, %v605
    %v607 = vpop.f32.mrf.mxu0
    %608 = vmatprep.mubr.f32.mxu0 0.0
    %609 = vmatmul.mubr.f32.gmra.mxu0 %v404
    %v610 = vpop.f32.mrf.mxu0
    %v611 = vadd.f32 %v373, %v610
    %v612 = vpop.f32.mrf.mxu0
    %613 = vmatprep.mubr.f32.mxu0 0.0
    %614 = vmatmul.mubr.f32.gmra.mxu0 %v407
    %v615 = vpop.f32.mrf.mxu0
    %v616 = vadd.f32 %v373, %v615
    %v617 = vpop.f32.mrf.mxu0
    %618 = vmatprep.mubr.f32.mxu0 0.0
    %619 = vmatmul.mubr.f32.gmra.mxu0 %v410
    %v620 = vpop.f32.mrf.mxu0
    %v621 = vadd.f32 %v373, %v620
    %v622 = vpop.f32.mrf.mxu0
    %623 = vmatprep.mubr.f32.mxu0 0.0
    %624 = vmatmul.mubr.f32.gmra.mxu0 %v413
    %v625 = vpop.f32.mrf.mxu0
    %v626 = vadd.f32 %v373, %v625
    %v627 = vpop.f32.mrf.mxu0
    %628 = vmatprep.mubr.f32.mxu0 0.0
    %629 = vmatmul.mubr.f32.gmra.mxu0 %v416
    %v630 = vpop.f32.mrf.mxu0
    %v631 = vadd.f32 %v373, %v630
    %v632 = vpop.f32.mrf.mxu0
    %633 = vmatprep.mubr.f32.mxu0 0.0
    %634 = vmatmul.mubr.f32.gmra.mxu0 %v419
    %v635 = vpop.f32.mrf.mxu0
    %v636 = vadd.f32 %v373, %v635
    %v637 = vpop.f32.mrf.mxu0
    %638 = vmatprep.mubr.f32.mxu0 0.0
    %639 = vmatmul.mubr.f32.gmra.mxu0 %v422
    %v640 = vpop.f32.mrf.mxu0
    %v641 = vadd.f32 %v373, %v640
    %v642 = vpop.f32.mrf.mxu0
    %643 = vmatprep.mubr.f32.mxu0 0.0
    %644 = vmatmul.mubr.f32.gmra.mxu0 %v425
    %v645 = vpop.f32.mrf.mxu0
    %v646 = vadd.f32 %v373, %v645
    %v647 = vpop.f32.mrf.mxu0
    %648 = vmatprep.mubr.f32.mxu0 0.0
    %649 = vmatmul.mubr.f32.gmra.mxu0 %v428
    %v650 = vpop.f32.mrf.mxu0
    %v651 = vadd.f32 %v373, %v650
    %v652 = vpop.f32.mrf.mxu0
    %653 = vmatprep.mubr.f32.mxu0 0.0
    %654 = vmatmul.mubr.f32.gmra.mxu0 %v431
    %v655 = vpop.f32.mrf.mxu0
    %v656 = vadd.f32 %v373, %v655
    %v657 = vpop.f32.mrf.mxu0
    %658 = vmatprep.mubr.f32.mxu0 0.0
    %659 = vmatmul.mubr.f32.gmra.mxu0 %v434
    %v660 = vpop.f32.mrf.mxu0
    %v661 = vadd.f32 %v373, %v660
    %v662 = vpop.f32.mrf.mxu0
    %663 = vmatprep.mubr.f32.mxu0 0.0
    %664 = vmatmul.mubr.f32.gmra.mxu0 %v437
    %v665 = vpop.f32.mrf.mxu0
    %v666 = vadd.f32 %v373, %v665
    %v667 = vpop.f32.mrf.mxu0
    %668 = vmatprep.mubr.f32.mxu0 0.0
    %669 = vmatmul.mubr.f32.gmra.mxu0 %v440
    %v670 = vpop.f32.mrf.mxu0
    %v671 = vadd.f32 %v373, %v670
    %v672 = vpop.f32.mrf.mxu0
    %673 = vmatprep.mubr.f32.mxu0 0.0
    %674 = vmatmul.mubr.f32.gmra.mxu0 %v443
    %v675 = vpop.f32.mrf.mxu0
    %v676 = vadd.f32 %v373, %v675
    %v677 = vpop.f32.mrf.mxu0
    %678 = vmatprep.mubr.f32.mxu0 0.0
    %679 = vmatmul.mubr.f32.gmra.mxu0 %v446
    %v680 = vpop.f32.mrf.mxu0
    %v681 = vadd.f32 %v373, %v680
    %v682 = vpop.f32.mrf.mxu0
    %683 = vmatprep.mubr.f32.mxu0 0.0
    %684 = vmatmul.mubr.f32.gmra.mxu0 %v449
    %v685 = vpop.f32.mrf.mxu0
    %v686 = vadd.f32 %v373, %v685
    %v687 = vpop.f32.mrf.mxu0
    %688 = vdwg.mxu0
    %689 = vst [vmem:[#allocation2] sm:$0xff] %v566
    %690 = vst [vmem:[#allocation2 + $0x8] sm:$0xff] %v571
    %691 = vst [vmem:[#allocation2 + $0x10] sm:$0xff] %v576
    %692 = vst [vmem:[#allocation2 + $0x18] sm:$0xff] %v581
    %693 = vst [vmem:[#allocation2 + $0x20] sm:$0xff] %v586
    %694 = vst [vmem:[#allocation2 + $0x28] sm:$0xff] %v591
    %695 = vst [vmem:[#allocation2 + $0x30] sm:$0xff] %v596
    %696 = vst [vmem:[#allocation2 + $0x38] sm:$0xff] %v601
    %697 = vst [vmem:[#allocation2 + $0x40] sm:$0xff] %v606
    %698 = vst [vmem:[#allocation2 + $0x48] sm:$0xff] %v611
    %699 = vst [vmem:[#allocation2 + $0x50] sm:$0xff] %v616
    %700 = vst [vmem:[#allocation2 + $0x58] sm:$0xff] %v621
    %701 = vst [vmem:[#allocation2 + $0x60] sm:$0xff] %v626
    %702 = vst [vmem:[#allocation2 + $0x68] sm:$0xff] %v631
    %703 = vst [vmem:[#allocation2 + $0x70] sm:$0xff] %v636
    %704 = vst [vmem:[#allocation2 + $0x78] sm:$0xff] %v641
    %705 = vst [vmem:[#allocation2 + $0x80] sm:$0xff] %v646
    %706 = vst [vmem:[#allocation2 + $0x88] sm:$0xff] %v651
    %707 = vst [vmem:[#allocation2 + $0x90] sm:$0xff] %v656
    %708 = vst [vmem:[#allocation2 + $0x98] sm:$0xff] %v661
    %709 = vst [vmem:[#allocation2 + $0xa0] sm:$0xff] %v666
    %710 = vst [vmem:[#allocation2 + $0xa8] sm:$0xff] %v671
    %711 = vst [vmem:[#allocation2 + $0xb0] sm:$0xff] %v676
    %712 = vst [vmem:[#allocation2 + $0xb8] sm:$0xff] %v681
    %713 = vst [vmem:[#allocation2 + $0xc0] sm:$0xff] %v686
    // Predicated region
    $region22: #{tpu_custom_call.1} parent=1 // pred_check
      _
    $region23: #{tpu_custom_call.1} parent=1 // pred_check_branch
      %715 = sbr.rel (0) target = $region25
    $region24: #{tpu_custom_call.1} parent=1 // pred_region
      %s717 = ssub.s32 3200, 3200
      %718 = vsyncadd [#allocation3], %s717
      %s719 = sshll.u32 [#allocation2], 4
      %s720 = int_to_ptr.vmem [resolvable:$true] %s719
      %725 = dma.vmem_to_hbm [thread:$0]  %s720, 3200, %s5, [#allocation3], 128, 128, 8
    $region25: #{tpu_custom_call.1} parent=1 // pred_fallthru
      _
    // Predicated region
    $region26: #{tpu_custom_call.1} parent=1 // pred_check
      _
    $region27: #{tpu_custom_call.1} parent=1 // pred_check_branch
      %727 = sbr.rel (0) target = $region29
    $region28: #{tpu_custom_call.1} parent=1 // pred_region
      %728 = dma.done [#allocation3], 3200
    $region29: #{tpu_custom_call.1} parent=1 // pred_fallthru
      _
    %729 = vsyncpa [#allocation3], 1

</llo_original>
